<compile_context>
chip_gen: v5e
topology: v5e:2x2
jax: 0.10.0
libtpu: 0.0.40
codegen_flags: <defaults>
</compile_context>

<pallas_src>
import jax
import jax.numpy as jnp
from jax.experimental import pallas as pl
from jax.experimental.pallas import tpu as pltpu
import numpy as np


def _round_up(x, m):
    return ((x + m - 1) // m) * m


def _cdiv(a, b):
    return (a + b - 1) // b


def _choose_tile_m(n, max_tile=1024, min_steps=2):
    """Pick a batch tile that (a) is a multiple of 16 (bf16 sublane packing),
    (b) minimizes ragged-batch padding, and (c) keeps >= min_steps grid steps
    (so the 'parallel' batch axis can shard across both v7x TensorCores),
    without inflating padding for tiny batches."""
    n_eff = _round_up(max(n, 16), 16)
    num_tiles = _cdiv(n_eff, max_tile)
    if n_eff >= min_steps * 16:
        num_tiles = max(num_tiles, min_steps)
    return _round_up(_cdiv(n_eff, num_tiles), 16)


def mlp_kernel(x_ref, w1_ref, b1_ref, w2_ref, b2_ref, w3_ref, b3_ref,
               w4_ref, b4_ref, o_ref):
    # Layer 1 (MXU): Linear(16, 512) + ReLU  (bf16 operands, f32 accumulate).
    h = jnp.dot(x_ref[...], w1_ref[...], preferred_element_type=jnp.float32)
    h = jnp.maximum(h + b1_ref[...], 0.0)
    # Layer 2 (MXU): Linear(512, 512) + ReLU.
    h = jnp.dot(h.astype(jnp.bfloat16), w2_ref[...],
                preferred_element_type=jnp.float32)
    h = jnp.maximum(h + b2_ref[...], 0.0)
    # Dropout(0.2): identity at inference time.
    # Layer 3 (MXU): Linear(512, 64) + ReLU.
    h = jnp.dot(h.astype(jnp.bfloat16), w3_ref[...],
                preferred_element_type=jnp.float32)
    h = jnp.maximum(h + b3_ref[...], 0.0)                      # (tile_m, 64) f32
    # Layer 4: Linear(64, 1), emitted LANE-DENSE as a (1, tile_m) row so the
    # output store is unmasked full vregs instead of tile_m/8 single-lane
    # masked stores: contract the 64-wide feature axis of h against the w4 row
    # with the batch axis landing on lanes (A @ B.T matmul pattern).
    y = jax.lax.dot_general(
        w4_ref[...], h.astype(jnp.bfloat16),
        dimension_numbers=(((1,), (1,)), ((), ())),
        preferred_element_type=jnp.float32)                    # (1, tile_m)
    o_ref[...] = (y + b4_ref[0, 0])[None]                      # (1, 1, tile_m)


def mlp_forward(x, params, max_tile_m=1024):
    """max_tile_m: sweep 512/1024/2048. The 1024 default keeps the VMEM working
    set around 5-8 MiB (fits v5e's 16 MiB scoped default and v7x's 64 MiB VMEM);
    going above 1024 raises vmem_limit_bytes explicitly below."""
    (w1, b1, w2, b2, w3, b3, w4, b4) = params
    n = x.shape[0]

    tile_m = _choose_tile_m(n, max_tile=max_tile_m)
    n_pad = _round_up(n, tile_m)
    num_tiles = n_pad // tile_m
    if n_pad != n:
        x = jnp.pad(x, ((0, n_pad - n), (0, 0)))

    # Cast once in the wrapper (NOT per grid step): bf16 weights + activations,
    # f32 accumulation inside the kernel. Biases stay f32.
    x_bf = x.astype(jnp.bfloat16)
    w1_bf = w1.astype(jnp.bfloat16)
    w2_bf = w2.astype(jnp.bfloat16)
    w3_bf = w3.astype(jnp.bfloat16)
    w4_bf = jnp.reshape(w4, (1, 64)).astype(jnp.bfloat16)   # (64,1) -> (1,64)
    b4_s = jnp.reshape(b4, (1, 1)).astype(jnp.float32)      # scalar -> SMEM

    def const(shape):
        return pl.BlockSpec(shape, lambda i: (0, 0))

    flops = 2 * n_pad * (16 * 512 + 512 * 512 + 512 * 64 + 64 * 1)
    bytes_accessed = int(
        x_bf.size * 2 + n_pad * 4                                  # streamed x + out
        + (w1_bf.size + w2_bf.size + w3_bf.size + w4_bf.size) * 2  # resident bf16 weights
        + (b1.size + b2.size + b3.size + 1) * 4)                   # f32 biases

    out = pl.pallas_call(
        mlp_kernel,
        out_shape=jax.ShapeDtypeStruct((num_tiles, 1, tile_m), jnp.float32),
        grid=(num_tiles,),
        in_specs=[
            pl.BlockSpec((tile_m, 16), lambda i: (i, 0)),       # x tile (streamed)
            const((16, 512)),                                    # w1 (VMEM-resident)
            const((1, 512)),                                     # b1
            const((512, 512)),                                   # w2
            const((1, 512)),                                     # b2
            const((512, 64)),                                    # w3
            const((1, 64)),                                      # b3
            const((1, 64)),                                      # w4 as a lane row
            pl.BlockSpec(memory_space=pltpu.MemorySpace.SMEM),   # b4 scalar
        ],
        out_specs=pl.BlockSpec((1, 1, tile_m), lambda i: (i, 0, 0)),
        compiler_params=pltpu.CompilerParams(
            dimension_semantics=("parallel",),
            vmem_limit_bytes=(64 * 1024 * 1024) if tile_m > 1024 else None),
        cost_estimate=pl.CostEstimate(flops=flops, transcendentals=0,
                                      bytes_accessed=bytes_accessed),
    )(x_bf, w1_bf, b1, w2_bf, b2, w3_bf, b3, w4_bf, b4_s)

    # (num_tiles, 1, tile_m) rows are contiguous in batch order -> (n_pad, 1) -> (n, 1).
    return jnp.reshape(out, (n_pad, 1))[:n]


def init_linear(key, fan_in, fan_out):
    """PyTorch nn.Linear-style init: U(-1/sqrt(fan_in), 1/sqrt(fan_in)).
    Weight returned already transposed to (fan_in, fan_out); bias as (1, fan_out)."""
    kw, kb = jax.random.split(key)
    bound = 1.0 / np.sqrt(fan_in)
    w = jax.random.uniform(kw, (fan_in, fan_out), jnp.float32, -bound, bound)
    b = jax.random.uniform(kb, (1, fan_out), jnp.float32, -bound, bound)
    return w, b


def reference_forward(x, params):
    """Mirrors the kernel's bf16-weight / bf16-activation, f32-accumulate math."""
    (w1, b1, w2, b2, w3, b3, w4, b4) = params
    bf = lambda a: a.astype(jnp.bfloat16).astype(jnp.float32)
    h = jnp.maximum(bf(x) @ bf(w1) + b1, 0.0)
    h = jnp.maximum(bf(h) @ bf(w2) + b2, 0.0)
    h = jnp.maximum(bf(h) @ bf(w3) + b3, 0.0)
    return bf(h) @ bf(w4) + b4


if __name__ == "__main__":
    key = jax.random.PRNGKey(0)
    k_x, k1, k2, k3, k4 = jax.random.split(key, 5)

    w1, b1 = init_linear(k1, 16, 512)
    w2, b2 = init_linear(k2, 512, 512)
    w3, b3 = init_linear(k3, 512, 64)
    w4, b4 = init_linear(k4, 64, 1)
    params = (w1, b1, w2, b2, w3, b3, w4, b4)

    # Small demo batch (single-tile path).
    batch = 8
    x = jax.random.normal(k_x, (batch, 16), jnp.float32)
    out = jax.block_until_ready(mlp_forward(x, params))
    ref = reference_forward(x, params)
    np.testing.assert_allclose(np.asarray(out), np.asarray(ref),
                               rtol=2e-2, atol=2e-2)
    assert out.shape == (batch, 1)

    # Larger, non-multiple-of-tile batch exercises the ragged tiling + 2-step grid.
    x2 = jax.random.normal(k_x, (300, 16), jnp.float32)
    out2 = jax.block_until_ready(mlp_forward(x2, params))
    ref2 = reference_forward(x2, params)
    np.testing.assert_allclose(np.asarray(out2), np.asarray(ref2),
                               rtol=2e-2, atol=2e-2)
    assert out2.shape == (300, 1)

    print("KERNEL_OK")
</pallas_src>

<mosaic_0001>
module attributes {stable_mosaic.version = 11 : i64} {
  func.func @mlp_kernel(%arg0: i32, %arg1: memref<16x16xbf16, #tpu.memory_space<vmem>>, %arg2: memref<16x512xbf16, #tpu.memory_space<vmem>>, %arg3: memref<1x512xf32, #tpu.memory_space<vmem>>, %arg4: memref<512x512xbf16, #tpu.memory_space<vmem>>, %arg5: memref<1x512xf32, #tpu.memory_space<vmem>>, %arg6: memref<512x64xbf16, #tpu.memory_space<vmem>>, %arg7: memref<1x64xf32, #tpu.memory_space<vmem>>, %arg8: memref<1x64xbf16, #tpu.memory_space<vmem>>, %arg9: memref<1x1xf32, #tpu.memory_space<smem>>, %arg10: memref<1x1x16xf32, #tpu.memory_space<vmem>>) attributes {dimension_semantics = [#tpu.dimension_semantics<parallel>], iteration_bounds = array<i64: 1>, scalar_prefetch = 0 : i64, scratch_operands = 0 : i64, tpu.core_type = #tpu.core_type<tc>, window_params = [{transform_indices = @transform_0, window_bounds = array<i64: 16, 16>}, {pipeline_mode = #tpu.pipeline_mode<synchronous>, transform_indices = @transform_1, window_bounds = array<i64: 16, 512>}, {pipeline_mode = #tpu.pipeline_mode<synchronous>, transform_indices = @transform_2, window_bounds = array<i64: 1, 512>}, {pipeline_mode = #tpu.pipeline_mode<synchronous>, transform_indices = @transform_3, window_bounds = array<i64: 512, 512>}, {pipeline_mode = #tpu.pipeline_mode<synchronous>, transform_indices = @transform_4, window_bounds = array<i64: 1, 512>}, {pipeline_mode = #tpu.pipeline_mode<synchronous>, transform_indices = @transform_5, window_bounds = array<i64: 512, 64>}, {pipeline_mode = #tpu.pipeline_mode<synchronous>, transform_indices = @transform_6, window_bounds = array<i64: 1, 64>}, {pipeline_mode = #tpu.pipeline_mode<synchronous>, transform_indices = @transform_7, window_bounds = array<i64: 1, 64>}, {transform_indices = @transform_8, window_bounds = array<i64: 1, 1>}, {transform_indices = @transform_9, window_bounds = array<i64: 1, 1, 16>}]} {
    %c0 = arith.constant 0 : index
    %c0_0 = arith.constant 0 : index
    %0 = vector.load %arg1[%c0, %c0_0] : memref<16x16xbf16, #tpu.memory_space<vmem>>, vector<16x16xbf16>
    %c0_1 = arith.constant 0 : index
    %c0_2 = arith.constant 0 : index
    %1 = vector.load %arg2[%c0_1, %c0_2] : memref<16x512xbf16, #tpu.memory_space<vmem>>, vector<16x512xbf16>
    %cst = arith.constant dense<0.000000e+00> : vector<16x512xf32>
    %2 = tpu.matmul %0, %1, %cst {dimension_numbers = #tpu.dot_dimension_numbers<[1], [0], [0], [1], [0, 0, 1, 1], [], []>} : vector<16x16xbf16>, vector<16x512xbf16>, vector<16x512xf32> -> vector<16x512xf32>
    %c0_3 = arith.constant 0 : index
    %c0_4 = arith.constant 0 : index
    %3 = vector.load %arg3[%c0_3, %c0_4] : memref<1x512xf32, #tpu.memory_space<vmem>>, vector<1x512xf32>
    %4 = vector.broadcast %3 : vector<1x512xf32> to vector<16x512xf32>
    %5 = arith.addf %2, %4 : vector<16x512xf32>
    %cst_5 = arith.constant 0.000000e+00 : f32
    %6 = vector.broadcast %cst_5 : f32 to vector<16x512xf32>
    %7 = arith.maximumf %5, %6 : vector<16x512xf32>
    %8 = arith.truncf %7 : vector<16x512xf32> to vector<16x512xbf16>
    %c0_6 = arith.constant 0 : index
    %c0_7 = arith.constant 0 : index
    %9 = vector.load %arg4[%c0_6, %c0_7] : memref<512x512xbf16, #tpu.memory_space<vmem>>, vector<512x512xbf16>
    %cst_8 = arith.constant dense<0.000000e+00> : vector<16x512xf32>
    %10 = tpu.matmul %8, %9, %cst_8 {dimension_numbers = #tpu.dot_dimension_numbers<[1], [0], [0], [1], [0, 0, 1, 1], [], []>} : vector<16x512xbf16>, vector<512x512xbf16>, vector<16x512xf32> -> vector<16x512xf32>
    %c0_9 = arith.constant 0 : index
    %c0_10 = arith.constant 0 : index
    %11 = vector.load %arg5[%c0_9, %c0_10] : memref<1x512xf32, #tpu.memory_space<vmem>>, vector<1x512xf32>
    %12 = vector.broadcast %11 : vector<1x512xf32> to vector<16x512xf32>
    %13 = arith.addf %10, %12 : vector<16x512xf32>
    %cst_11 = arith.constant 0.000000e+00 : f32
    %14 = vector.broadcast %cst_11 : f32 to vector<16x512xf32>
    %15 = arith.maximumf %13, %14 : vector<16x512xf32>
    %16 = arith.truncf %15 : vector<16x512xf32> to vector<16x512xbf16>
    %c0_12 = arith.constant 0 : index
    %c0_13 = arith.constant 0 : index
    %17 = vector.load %arg6[%c0_12, %c0_13] : memref<512x64xbf16, #tpu.memory_space<vmem>>, vector<512x64xbf16>
    %cst_14 = arith.constant dense<0.000000e+00> : vector<16x64xf32>
    %18 = tpu.matmul %16, %17, %cst_14 {dimension_numbers = #tpu.dot_dimension_numbers<[1], [0], [0], [1], [0, 0, 1, 1], [], []>} : vector<16x512xbf16>, vector<512x64xbf16>, vector<16x64xf32> -> vector<16x64xf32>
    %c0_15 = arith.constant 0 : index
    %c0_16 = arith.constant 0 : index
    %19 = vector.load %arg7[%c0_15, %c0_16] : memref<1x64xf32, #tpu.memory_space<vmem>>, vector<1x64xf32>
    %20 = vector.broadcast %19 : vector<1x64xf32> to vector<16x64xf32>
    %21 = arith.addf %18, %20 : vector<16x64xf32>
    %cst_17 = arith.constant 0.000000e+00 : f32
    %22 = vector.broadcast %cst_17 : f32 to vector<16x64xf32>
    %23 = arith.maximumf %21, %22 : vector<16x64xf32>
    %c0_18 = arith.constant 0 : index
    %c0_19 = arith.constant 0 : index
    %24 = vector.load %arg8[%c0_18, %c0_19] : memref<1x64xbf16, #tpu.memory_space<vmem>>, vector<1x64xbf16>
    %25 = arith.truncf %23 : vector<16x64xf32> to vector<16x64xbf16>
    %cst_20 = arith.constant dense<0.000000e+00> : vector<1x16xf32>
    %26 = tpu.matmul %24, %25, %cst_20 {dimension_numbers = #tpu.dot_dimension_numbers<[1], [1], [0], [0], [0, 0, 1, 0], [], []>} : vector<1x64xbf16>, vector<16x64xbf16>, vector<1x16xf32> -> vector<1x16xf32>
    %c0_21 = arith.constant 0 : index
    %c0_22 = arith.constant 0 : index
    %27 = memref.load %arg9[%c0_21, %c0_22] : memref<1x1xf32, #tpu.memory_space<smem>>
    %28 = vector.broadcast %27 : f32 to vector<1x16xf32>
    %29 = arith.addf %26, %28 : vector<1x16xf32>
    %30 = vector.shape_cast %29 : vector<1x16xf32> to vector<1x1x16xf32>
    %c0_23 = arith.constant 0 : index
    %c0_24 = arith.constant 0 : index
    %c0_25 = arith.constant 0 : index
    %31 = vector.load %arg10[%c0_23, %c0_24, %c0_25] : memref<1x1x16xf32, #tpu.memory_space<vmem>>, vector<1x1x16xf32>
    tpu.vector_store %arg10[%c0_23, %c0_24, %c0_25], %30 {strides = array<i32>} : memref<1x1x16xf32, #tpu.memory_space<vmem>>, vector<1x1x16xf32>,
    return
  }
  func.func @transform_0(%arg0: i32) -> (i32, i32) {
    %c0_i32 = arith.constant 0 : i32
    %c0_i32_0 = arith.constant 0 : i32
    return %arg0, %c0_i32 : i32, i32
  }
  func.func @transform_1(%arg0: i32) -> (i32, i32) {
    %c0_i32 = arith.constant 0 : i32
    %c0_i32_0 = arith.constant 0 : i32
    %c0_i32_1 = arith.constant 0 : i32
    return %c0_i32, %c0_i32_0 : i32, i32
  }
  func.func @transform_2(%arg0: i32) -> (i32, i32) {
    %c0_i32 = arith.constant 0 : i32
    %c0_i32_0 = arith.constant 0 : i32
    %c0_i32_1 = arith.constant 0 : i32
    return %c0_i32, %c0_i32_0 : i32, i32
  }
  func.func @transform_3(%arg0: i32) -> (i32, i32) {
    %c0_i32 = arith.constant 0 : i32
    %c0_i32_0 = arith.constant 0 : i32
    %c0_i32_1 = arith.constant 0 : i32
    return %c0_i32, %c0_i32_0 : i32, i32
  }
  func.func @transform_4(%arg0: i32) -> (i32, i32) {
    %c0_i32 = arith.constant 0 : i32
    %c0_i32_0 = arith.constant 0 : i32
    %c0_i32_1 = arith.constant 0 : i32
    return %c0_i32, %c0_i32_0 : i32, i32
  }
  func.func @transform_5(%arg0: i32) -> (i32, i32) {
    %c0_i32 = arith.constant 0 : i32
    %c0_i32_0 = arith.constant 0 : i32
    %c0_i32_1 = arith.constant 0 : i32
    return %c0_i32, %c0_i32_0 : i32, i32
  }
  func.func @transform_6(%arg0: i32) -> (i32, i32) {
    %c0_i32 = arith.constant 0 : i32
    %c0_i32_0 = arith.constant 0 : i32
    %c0_i32_1 = arith.constant 0 : i32
    return %c0_i32, %c0_i32_0 : i32, i32
  }
  func.func @transform_7(%arg0: i32) -> (i32, i32) {
    %c0_i32 = arith.constant 0 : i32
    %c0_i32_0 = arith.constant 0 : i32
    %c0_i32_1 = arith.constant 0 : i32
    return %c0_i32, %c0_i32_0 : i32, i32
  }
  func.func @transform_8(%arg0: i32) -> (i32, i32) {
    %c0_i32 = arith.constant 0 : i32
    %c0_i32_0 = arith.constant 0 : i32
    %c0_i32_1 = arith.constant 0 : i32
    return %c0_i32, %c0_i32_0 : i32, i32
  }
  func.func @transform_9(%arg0: i32) -> (i32, i32, i32) {
    %c0_i32 = arith.constant 0 : i32
    %c0_i32_0 = arith.constant 0 : i32
    %c0_i32_1 = arith.constant 0 : i32
    return %arg0, %c0_i32, %c0_i32_0 : i32, i32, i32
  }
}

</mosaic_0001>

<llo_original>
// kernel: tpu_custom_call.1
$region0: #{tpu_custom_call.1}
  #allocation0 [shape = 'u32[]', space=smem, size = 0x4, offset = 0x4, fixed_abs, tag = 'smem constant byte address 0x4 - core index']
  #allocation1 [shape = 'u32[72,128]{1,0:T(1,128)}', space=vmem, size = 0x9000, scoped, tag = 'internal scratch']
  #allocation2 [shape = 'f32[1,1]{1,0:T(1,128)S(6)}', space=smem, size = 0x200, scoped, tag = 'scoped memory for tpu_custom_call.1']
  %s0 = inlined_call_operand.vmem [shape: bf16[16,16], index: 0, kind: input, shape index: {}]
  %s1 = inlined_call_operand.vmem [shape: bf16[16,512], index: 1, kind: input, shape index: {}]
  %s2 = inlined_call_operand.vmem [shape: f32[1,512], index: 2, kind: input, shape index: {}]
  %s3 = inlined_call_operand.hbm [shape: bf16[512,512], index: 3, kind: input, shape index: {}]
  %s4 = inlined_call_operand.vmem [shape: f32[1,512], index: 4, kind: input, shape index: {}]
  %s5 = inlined_call_operand.vmem [shape: bf16[512,64], index: 5, kind: input, shape index: {}]
  %s6 = inlined_call_operand.vmem [shape: f32[1,64], index: 6, kind: input, shape index: {}]
  %s7 = inlined_call_operand.vmem [shape: bf16[1,64], index: 7, kind: input, shape index: {}]
  %s8 = inlined_call_operand.<no memory space> [shape: f32[1,1], index: 8, kind: input, shape index: {}]
  %s9 = inlined_call_operand.hbm [shape: f32[1,1,16], index: 9, kind: output, shape index: {}]
  %s10 = sld [smem:[#allocation0]]
  $region50: #{tpu_custom_call.1} parent=0
    _
  %s12 = ssub.s32 1, %s10
  %s13 = scalar_select 0, %s12, %s10
  %14 = sst [smem:[#allocation2]] %s8
  $region1: #{tpu_custom_call.1} parent=0
    #allocation3 [shape = 'u8[524288]{0}', space=vmem, size = 0x80000, scoped, tag = 'input window, operand 3, single buffered']
    #allocation4 [shape = 's32[1]{0}', space=sflag, size = 0x4, scoped, tag = 'scoped memory for tpu_custom_call.1']
    #allocation5 [shape = 's32[1]{0}', space=sflag, size = 0x4, scoped, tag = 'scoped memory for tpu_custom_call.1']
    #allocation6 [shape = 'u8[512]{0}', space=vmem, size = 0x400, scoped, tag = 'output window, operand 0, single buffered']
    %15 = vsyncpa [#allocation4], 0
    %16 = vsyncpa [#allocation5], 0
    // Predicated region
    $region2: #{tpu_custom_call.1} parent=1 // pred_check
      _
    $region3: #{tpu_custom_call.1} parent=1 // pred_check_branch
      %18 = sbr.rel (0) target = $region5
    $region4: #{tpu_custom_call.1} parent=1 // pred_region
      _
    $region5: #{tpu_custom_call.1} parent=1 // pred_fallthru
      _
    // Predicated region
    $region6: #{tpu_custom_call.1} parent=1 // pred_check
      _
    $region7: #{tpu_custom_call.1} parent=1 // pred_check_branch
      %20 = sbr.rel (0) target = $region9
    $region8: #{tpu_custom_call.1} parent=1 // pred_region
      _
    $region9: #{tpu_custom_call.1} parent=1 // pred_fallthru
      _
    // Predicated region
    $region10: #{tpu_custom_call.1} parent=1 // pred_check
      _
    $region11: #{tpu_custom_call.1} parent=1 // pred_check_branch
      %22 = sbr.rel (0) target = $region13
    $region12: #{tpu_custom_call.1} parent=1 // pred_region
      _
    $region13: #{tpu_custom_call.1} parent=1 // pred_fallthru
      _
    // Predicated region
    $region14: #{tpu_custom_call.1} parent=1 // pred_check
      _
    $region15: #{tpu_custom_call.1} parent=1 // pred_check_branch
      %24 = sbr.rel (0) target = $region17
    $region16: #{tpu_custom_call.1} parent=1 // pred_region
      %26 = vsyncadd [#allocation4], 0
      %s27 = sshll.u32 %s3, 4
      %s28 = int_to_ptr.hbm [resolvable:$true] %s27
      %s29 = sshll.u32 [#allocation3], 4
      %s30 = int_to_ptr.vmem [resolvable:$true] %s29
      %35 = dma.hbm_to_vmem [thread:$0]  %s28, 16384, %s30, [#allocation4], 256, 256, 16
    $region17: #{tpu_custom_call.1} parent=1 // pred_fallthru
      _
    // Predicated region
    $region18: #{tpu_custom_call.1} parent=1 // pred_check
      _
    $region19: #{tpu_custom_call.1} parent=1 // pred_check_branch
      %37 = sbr.rel (0) target = $region21
    $region20: #{tpu_custom_call.1} parent=1 // pred_region
      _
    $region21: #{tpu_custom_call.1} parent=1 // pred_fallthru
      _
    // Predicated region
    $region22: #{tpu_custom_call.1} parent=1 // pred_check
      _
    $region23: #{tpu_custom_call.1} parent=1 // pred_check_branch
      %39 = sbr.rel (0) target = $region25
    $region24: #{tpu_custom_call.1} parent=1 // pred_region
      _
    $region25: #{tpu_custom_call.1} parent=1 // pred_fallthru
      _
    // Predicated region
    $region26: #{tpu_custom_call.1} parent=1 // pred_check
      _
    $region27: #{tpu_custom_call.1} parent=1 // pred_check_branch
      %41 = sbr.rel (0) target = $region29
    $region28: #{tpu_custom_call.1} parent=1 // pred_region
      _
    $region29: #{tpu_custom_call.1} parent=1 // pred_fallthru
      _
    // Predicated region
    $region30: #{tpu_custom_call.1} parent=1 // pred_check
      _
    $region31: #{tpu_custom_call.1} parent=1 // pred_check_branch
      %43 = sbr.rel (0) target = $region33
    $region32: #{tpu_custom_call.1} parent=1 // pred_region
      _
    $region33: #{tpu_custom_call.1} parent=1 // pred_fallthru
      _
    // Predicated region
    $region34: #{tpu_custom_call.1} parent=1 // pred_check
      _
    $region35: #{tpu_custom_call.1} parent=1 // pred_check_branch
      %45 = sbr.rel (0) target = $region37
    $region36: #{tpu_custom_call.1} parent=1 // pred_region
      _
    $region37: #{tpu_custom_call.1} parent=1 // pred_fallthru
      _
    // Predicated region
    $region38: #{tpu_custom_call.1} parent=1 // pred_check
      _
    $region39: #{tpu_custom_call.1} parent=1 // pred_check_branch
      %47 = sbr.rel (0) target = $region41
    $region40: #{tpu_custom_call.1} parent=1 // pred_region
      %49 = dma.done [#allocation4], 16384
    $region41: #{tpu_custom_call.1} parent=1 // pred_fallthru
      _
    %v51 = vld [vmem:[%s0] sm:$0xf]
    %v52 = vld [vmem:[%s0 + $0x4] sm:$0xf]
    %v53 = vld [vmem:[%s1] sm:$0xff]
    %v54 = vld [vmem:[%s1 + $0x8] sm:$0xff]
    %v55 = vld [vmem:[%s1 + $0x10] sm:$0xff]
    %v56 = vld [vmem:[%s1 + $0x18] sm:$0xff]
    %v57 = vld [vmem:[%s2] sm:$0xf]
    %v59 = vperm.slane %v57, 0
    %v60 = vperm.slane %v57, 1
    %v61 = vperm.slane %v57, 2
    %v62 = vperm.slane %v57, 3
    %v69 = vunpack.c.l.b16 %v51
    %v70 = vunpack.c.l.b16 %v52
    %v71 = vpack.c.b16 %v70, %v69
    %v76 = vunpack.c.l.b16 %v53
    %v77 = vunpack.c.h.b16 %v53
    %v78 = vunpack.c.l.b16 %v54
    %v79 = vunpack.c.h.b16 %v54
    %v80 = vunpack.c.l.b16 %v55
    %v81 = vunpack.c.h.b16 %v55
    %v82 = vunpack.c.l.b16 %v56
    %v83 = vunpack.c.h.b16 %v56
    %v84 = vpack.c.b16 %v80, %v76
    %v85 = vpack.c.b16 %v81, %v77
    %v86 = vpack.c.b16 %v82, %v78
    %v87 = vpack.c.b16 %v83, %v79
    %vm92 = vcmask 130048
    %v94 = vsel %vm92, %v71, 0
    %96 = vmatpush.bf16.msra.mxu0 0
    %97 = vmatpush.bf16.msra.mxu0 0
    %98 = vmatpush.bf16.msra.mxu0 0
    %99 = vmatpush.bf16.msra.mxu0 0
    %100 = vmatpush.bf16.msra.mxu0 0
    %101 = vmatpush.bf16.msra.mxu0 0
    %102 = vmatpush.bf16.msra.mxu0 0
    %103 = vmatpush.bf16.msra.mxu0 %v84
    %104 = vmatmul.bf16.gmra.mxu0 %v94
    %v105 = vpop.f32.mrf.mxu0
    %v106 = vadd.f32 %v59, %v105
    %v107 = vpop.f32.mrf.mxu0
    %v108 = vadd.f32 %v59, %v107
    %109 = vdwg.mxu0
    %110 = vmatpush.bf16.msra.mxu0 0
    %111 = vmatpush.bf16.msra.mxu0 0
    %112 = vmatpush.bf16.msra.mxu0 0
    %113 = vmatpush.bf16.msra.mxu0 0
    %114 = vmatpush.bf16.msra.mxu0 0
    %115 = vmatpush.bf16.msra.mxu0 0
    %116 = vmatpush.bf16.msra.mxu0 0
    %117 = vmatpush.bf16.msra.mxu0 %v85
    %118 = vmatmul.bf16.gmra.mxu0 %v94
    %v119 = vpop.f32.mrf.mxu0
    %v120 = vadd.f32 %v60, %v119
    %v121 = vpop.f32.mrf.mxu0
    %v122 = vadd.f32 %v60, %v121
    %123 = vdwg.mxu0
    %124 = vmatpush.bf16.msra.mxu0 0
    %125 = vmatpush.bf16.msra.mxu0 0
    %126 = vmatpush.bf16.msra.mxu0 0
    %127 = vmatpush.bf16.msra.mxu0 0
    %128 = vmatpush.bf16.msra.mxu0 0
    %129 = vmatpush.bf16.msra.mxu0 0
    %130 = vmatpush.bf16.msra.mxu0 0
    %131 = vmatpush.bf16.msra.mxu0 %v86
    %132 = vmatmul.bf16.gmra.mxu0 %v94
    %v133 = vpop.f32.mrf.mxu0
    %v134 = vadd.f32 %v61, %v133
    %v135 = vpop.f32.mrf.mxu0
    %v136 = vadd.f32 %v61, %v135
    %137 = vdwg.mxu0
    %138 = vmatpush.bf16.msra.mxu0 0
    %139 = vmatpush.bf16.msra.mxu0 0
    %140 = vmatpush.bf16.msra.mxu0 0
    %141 = vmatpush.bf16.msra.mxu0 0
    %142 = vmatpush.bf16.msra.mxu0 0
    %143 = vmatpush.bf16.msra.mxu0 0
    %144 = vmatpush.bf16.msra.mxu0 0
    %145 = vmatpush.bf16.msra.mxu0 %v87
    %146 = vmatmul.bf16.gmra.mxu0 %v94
    %v147 = vpop.f32.mrf.mxu0
    %v148 = vadd.f32 %v62, %v147
    %v149 = vpop.f32.mrf.mxu0
    %v150 = vadd.f32 %v62, %v149
    %151 = vdwg.mxu0
    %v152 = vmax.f32 %v106, 0.0
    %v153 = vmax.f32 %v120, 0.0
    %v154 = vmax.f32 %v134, 0.0
    %v155 = vmax.f32 %v148, 0.0
    %v156 = vmax.f32 %v108, 0.0
    %v157 = vmax.f32 %v122, 0.0
    %v158 = vmax.f32 %v136, 0.0
    %v159 = vmax.f32 %v150, 0.0
    %v160 = vpack.c.bf16 %v156, %v152
    %v161 = vpack.c.bf16 %v157, %v153
    %v162 = vpack.c.bf16 %v158, %v154
    %v163 = vpack.c.bf16 %v159, %v155
    %v164 = vld [vmem:[#allocation3] sm:$0xff]
    %v165 = vld [vmem:[#allocation3 + $0x8] sm:$0xff]
    %v166 = vld [vmem:[#allocation3 + $0x10] sm:$0xff]
    %v167 = vld [vmem:[#allocation3 + $0x18] sm:$0xff]
    %v168 = vld [vmem:[#allocation3 + $0x20] sm:$0xff]
    %v169 = vld [vmem:[#allocation3 + $0x28] sm:$0xff]
    %v170 = vld [vmem:[#allocation3 + $0x30] sm:$0xff]
    %v171 = vld [vmem:[#allocation3 + $0x38] sm:$0xff]
    %v172 = vld [vmem:[#allocation3 + $0x40] sm:$0xff]
    %v173 = vld [vmem:[#allocation3 + $0x48] sm:$0xff]
    %v174 = vld [vmem:[#allocation3 + $0x50] sm:$0xff]
    %v175 = vld [vmem:[#allocation3 + $0x58] sm:$0xff]
    %v176 = vld [vmem:[#allocation3 + $0x60] sm:$0xff]
    %v177 = vld [vmem:[#allocation3 + $0x68] sm:$0xff]
    %v178 = vld [vmem:[#allocation3 + $0x70] sm:$0xff]
    %v179 = vld [vmem:[#allocation3 + $0x78] sm:$0xff]
    %v180 = vld [vmem:[#allocation3 + $0x80] sm:$0xff]
    %v181 = vld [vmem:[#allocation3 + $0x88] sm:$0xff]
    %v182 = vld [vmem:[#allocation3 + $0x90] sm:$0xff]
    %v183 = vld [vmem:[#allocation3 + $0x98] sm:$0xff]
    %v184 = vld [vmem:[#allocation3 + $0xa0] sm:$0xff]
    %v185 = vld [vmem:[#allocation3 + $0xa8] sm:$0xff]
    %v186 = vld [vmem:[#allocation3 + $0xb0] sm:$0xff]
    %v187 = vld [vmem:[#allocation3 + $0xb8] sm:$0xff]
    %v188 = vld [vmem:[#allocation3 + $0xc0] sm:$0xff]
    %v189 = vld [vmem:[#allocation3 + $0xc8] sm:$0xff]
    %v190 = vld [vmem:[#allocation3 + $0xd0] sm:$0xff]
    %v191 = vld [vmem:[#allocation3 + $0xd8] sm:$0xff]
    %v192 = vld [vmem:[#allocation3 + $0xe0] sm:$0xff]
    %v193 = vld [vmem:[#allocation3 + $0xe8] sm:$0xff]
    %v194 = vld [vmem:[#allocation3 + $0xf0] sm:$0xff]
    %v195 = vld [vmem:[#allocation3 + $0xf8] sm:$0xff]
    %v196 = vld [vmem:[#allocation3 + $0x100] sm:$0xff]
    %v197 = vld [vmem:[#allocation3 + $0x108] sm:$0xff]
    %v198 = vld [vmem:[#allocation3 + $0x110] sm:$0xff]
    %v199 = vld [vmem:[#allocation3 + $0x118] sm:$0xff]
    %v200 = vld [vmem:[#allocation3 + $0x120] sm:$0xff]
    %v201 = vld [vmem:[#allocation3 + $0x128] sm:$0xff]
    %v202 = vld [vmem:[#allocation3 + $0x130] sm:$0xff]
    %v203 = vld [vmem:[#allocation3 + $0x138] sm:$0xff]
    %v204 = vld [vmem:[#allocation3 + $0x140] sm:$0xff]
    %v205 = vld [vmem:[#allocation3 + $0x148] sm:$0xff]
    %v206 = vld [vmem:[#allocation3 + $0x150] sm:$0xff]
    %v207 = vld [vmem:[#allocation3 + $0x158] sm:$0xff]
    %v208 = vld [vmem:[#allocation3 + $0x160] sm:$0xff]
    %v209 = vld [vmem:[#allocation3 + $0x168] sm:$0xff]
    %v210 = vld [vmem:[#allocation3 + $0x170] sm:$0xff]
    %v211 = vld [vmem:[#allocation3 + $0x178] sm:$0xff]
    %v212 = vld [vmem:[#allocation3 + $0x180] sm:$0xff]
    %v213 = vld [vmem:[#allocation3 + $0x188] sm:$0xff]
    %v214 = vld [vmem:[#allocation3 + $0x190] sm:$0xff]
    %v215 = vld [vmem:[#allocation3 + $0x198] sm:$0xff]
    %v216 = vld [vmem:[#allocation3 + $0x1a0] sm:$0xff]
    %v217 = vld [vmem:[#allocation3 + $0x1a8] sm:$0xff]
    %v218 = vld [vmem:[#allocation3 + $0x1b0] sm:$0xff]
    %v219 = vld [vmem:[#allocation3 + $0x1b8] sm:$0xff]
    %v220 = vld [vmem:[#allocation3 + $0x1c0] sm:$0xff]
    %v221 = vld [vmem:[#allocation3 + $0x1c8] sm:$0xff]
    %v222 = vld [vmem:[#allocation3 + $0x1d0] sm:$0xff]
    %v223 = vld [vmem:[#allocation3 + $0x1d8] sm:$0xff]
    %v224 = vld [vmem:[#allocation3 + $0x1e0] sm:$0xff]
    %v225 = vld [vmem:[#allocation3 + $0x1e8] sm:$0xff]
    %v226 = vld [vmem:[#allocation3 + $0x1f0] sm:$0xff]
    %v227 = vld [vmem:[#allocation3 + $0x1f8] sm:$0xff]
    %v228 = vld [vmem:[#allocation3 + $0x200] sm:$0xff]
    %v229 = vld [vmem:[#allocation3 + $0x208] sm:$0xff]
    %v230 = vld [vmem:[#allocation3 + $0x210] sm:$0xff]
    %v231 = vld [vmem:[#allocation3 + $0x218] sm:$0xff]
    %v232 = vld [vmem:[#allocation3 + $0x220] sm:$0xff]
    %v233 = vld [vmem:[#allocation3 + $0x228] sm:$0xff]
    %v234 = vld [vmem:[#allocation3 + $0x230] sm:$0xff]
    %v235 = vld [vmem:[#allocation3 + $0x238] sm:$0xff]
    %v236 = vld [vmem:[#allocation3 + $0x240] sm:$0xff]
    %v237 = vld [vmem:[#allocation3 + $0x248] sm:$0xff]
    %v238 = vld [vmem:[#allocation3 + $0x250] sm:$0xff]
    %v239 = vld [vmem:[#allocation3 + $0x258] sm:$0xff]
    %v240 = vld [vmem:[#allocation3 + $0x260] sm:$0xff]
    %v241 = vld [vmem:[#allocation3 + $0x268] sm:$0xff]
    %v242 = vld [vmem:[#allocation3 + $0x270] sm:$0xff]
    %v243 = vld [vmem:[#allocation3 + $0x278] sm:$0xff]
    %v244 = vld [vmem:[#allocation3 + $0x280] sm:$0xff]
    %v245 = vld [vmem:[#allocation3 + $0x288] sm:$0xff]
    %v246 = vld [vmem:[#allocation3 + $0x290] sm:$0xff]
    %v247 = vld [vmem:[#allocation3 + $0x298] sm:$0xff]
    %v248 = vld [vmem:[#allocation3 + $0x2a0] sm:$0xff]
    %v249 = vld [vmem:[#allocation3 + $0x2a8] sm:$0xff]
    %v250 = vld [vmem:[#allocation3 + $0x2b0] sm:$0xff]
    %v251 = vld [vmem:[#allocation3 + $0x2b8] sm:$0xff]
    %v252 = vld [vmem:[#allocation3 + $0x2c0] sm:$0xff]
    %v253 = vld [vmem:[#allocation3 + $0x2c8] sm:$0xff]
    %v254 = vld [vmem:[#allocation3 + $0x2d0] sm:$0xff]
    %v255 = vld [vmem:[#allocation3 + $0x2d8] sm:$0xff]
    %v256 = vld [vmem:[#allocation3 + $0x2e0] sm:$0xff]
    %v257 = vld [vmem:[#allocation3 + $0x2e8] sm:$0xff]
    %v258 = vld [vmem:[#allocation3 + $0x2f0] sm:$0xff]
    %v259 = vld [vmem:[#allocation3 + $0x2f8] sm:$0xff]
    %v260 = vld [vmem:[#allocation3 + $0x300] sm:$0xff]
    %v261 = vld [vmem:[#allocation3 + $0x308] sm:$0xff]
    %v262 = vld [vmem:[#allocation3 + $0x310] sm:$0xff]
    %v263 = vld [vmem:[#allocation3 + $0x318] sm:$0xff]
    %v264 = vld [vmem:[#allocation3 + $0x320] sm:$0xff]
    %v265 = vld [vmem:[#allocation3 + $0x328] sm:$0xff]
    %v266 = vld [vmem:[#allocation3 + $0x330] sm:$0xff]
    %v267 = vld [vmem:[#allocation3 + $0x338] sm:$0xff]
    %v268 = vld [vmem:[#allocation3 + $0x340] sm:$0xff]
    %v269 = vld [vmem:[#allocation3 + $0x348] sm:$0xff]
    %v270 = vld [vmem:[#allocation3 + $0x350] sm:$0xff]
    %v271 = vld [vmem:[#allocation3 + $0x358] sm:$0xff]
    %v272 = vld [vmem:[#allocation3 + $0x360] sm:$0xff]
    %v273 = vld [vmem:[#allocation3 + $0x368] sm:$0xff]
    %v274 = vld [vmem:[#allocation3 + $0x370] sm:$0xff]
    %v275 = vld [vmem:[#allocation3 + $0x378] sm:$0xff]
    %v276 = vld [vmem:[#allocation3 + $0x380] sm:$0xff]
    %v277 = vld [vmem:[#allocation3 + $0x388] sm:$0xff]
    %v278 = vld [vmem:[#allocation3 + $0x390] sm:$0xff]
    %v279 = vld [vmem:[#allocation3 + $0x398] sm:$0xff]
    %v280 = vld [vmem:[#allocation3 + $0x3a0] sm:$0xff]
    %v281 = vld [vmem:[#allocation3 + $0x3a8] sm:$0xff]
    %v282 = vld [vmem:[#allocation3 + $0x3b0] sm:$0xff]
    %v283 = vld [vmem:[#allocation3 + $0x3b8] sm:$0xff]
    %v284 = vld [vmem:[#allocation3 + $0x3c0] sm:$0xff]
    %v285 = vld [vmem:[#allocation3 + $0x3c8] sm:$0xff]
    %v286 = vld [vmem:[#allocation3 + $0x3d0] sm:$0xff]
    %v287 = vld [vmem:[#allocation3 + $0x3d8] sm:$0xff]
    %v288 = vld [vmem:[#allocation3 + $0x3e0] sm:$0xff]
    %v289 = vld [vmem:[#allocation3 + $0x3e8] sm:$0xff]
    %v290 = vld [vmem:[#allocation3 + $0x3f0] sm:$0xff]
    %v291 = vld [vmem:[#allocation3 + $0x3f8] sm:$0xff]
    %v292 = vld [vmem:[%s4] sm:$0xf]
    %v294 = vperm.slane %v292, 0
    %v295 = vperm.slane %v292, 1
    %v296 = vperm.slane %v292, 2
    %v297 = vperm.slane %v292, 3
    %v430 = vunpack.c.l.b16 %v164
    %v431 = vunpack.c.h.b16 %v164
    %v432 = vunpack.c.l.b16 %v165
    %v433 = vunpack.c.h.b16 %v165
    %v434 = vunpack.c.l.b16 %v166
    %v435 = vunpack.c.h.b16 %v166
    %v436 = vunpack.c.l.b16 %v167
    %v437 = vunpack.c.h.b16 %v167
    %v438 = vunpack.c.l.b16 %v168
    %v439 = vunpack.c.h.b16 %v168
    %v440 = vunpack.c.l.b16 %v169
    %v441 = vunpack.c.h.b16 %v169
    %v442 = vunpack.c.l.b16 %v170
    %v443 = vunpack.c.h.b16 %v170
    %v444 = vunpack.c.l.b16 %v171
    %v445 = vunpack.c.h.b16 %v171
    %v446 = vunpack.c.l.b16 %v172
    %v447 = vunpack.c.h.b16 %v172
    %v448 = vunpack.c.l.b16 %v173
    %v449 = vunpack.c.h.b16 %v173
    %v450 = vunpack.c.l.b16 %v174
    %v451 = vunpack.c.h.b16 %v174
    %v452 = vunpack.c.l.b16 %v175
    %v453 = vunpack.c.h.b16 %v175
    %v454 = vunpack.c.l.b16 %v176
    %v455 = vunpack.c.h.b16 %v176
    %v456 = vunpack.c.l.b16 %v177
    %v457 = vunpack.c.h.b16 %v177
    %v458 = vunpack.c.l.b16 %v178
    %v459 = vunpack.c.h.b16 %v178
    %v460 = vunpack.c.l.b16 %v179
    %v461 = vunpack.c.h.b16 %v179
    %v462 = vunpack.c.l.b16 %v180
    %v463 = vunpack.c.h.b16 %v180
    %v464 = vunpack.c.l.b16 %v181
    %v465 = vunpack.c.h.b16 %v181
    %v466 = vunpack.c.l.b16 %v182
    %v467 = vunpack.c.h.b16 %v182
    %v468 = vunpack.c.l.b16 %v183
    %v469 = vunpack.c.h.b16 %v183
    %v470 = vunpack.c.l.b16 %v184
    %v471 = vunpack.c.h.b16 %v184
    %v472 = vunpack.c.l.b16 %v185
    %v473 = vunpack.c.h.b16 %v185
    %v474 = vunpack.c.l.b16 %v186
    %v475 = vunpack.c.h.b16 %v186
    %v476 = vunpack.c.l.b16 %v187
    %v477 = vunpack.c.h.b16 %v187
    %v478 = vunpack.c.l.b16 %v188
    %v479 = vunpack.c.h.b16 %v188
    %v480 = vunpack.c.l.b16 %v189
    %v481 = vunpack.c.h.b16 %v189
    %v482 = vunpack.c.l.b16 %v190
    %v483 = vunpack.c.h.b16 %v190
    %v484 = vunpack.c.l.b16 %v191
    %v485 = vunpack.c.h.b16 %v191
    %v486 = vunpack.c.l.b16 %v192
    %v487 = vunpack.c.h.b16 %v192
    %v488 = vunpack.c.l.b16 %v193
    %v489 = vunpack.c.h.b16 %v193
    %v490 = vunpack.c.l.b16 %v194
    %v491 = vunpack.c.h.b16 %v194
    %v492 = vunpack.c.l.b16 %v195
    %v493 = vunpack.c.h.b16 %v195
    %v494 = vunpack.c.l.b16 %v196
    %v495 = vunpack.c.h.b16 %v196
    %v496 = vunpack.c.l.b16 %v197
    %v497 = vunpack.c.h.b16 %v197
    %v498 = vunpack.c.l.b16 %v198
    %v499 = vunpack.c.h.b16 %v198
    %v500 = vunpack.c.l.b16 %v199
    %v501 = vunpack.c.h.b16 %v199
    %v502 = vunpack.c.l.b16 %v200
    %v503 = vunpack.c.h.b16 %v200
    %v504 = vunpack.c.l.b16 %v201
    %v505 = vunpack.c.h.b16 %v201
    %v506 = vunpack.c.l.b16 %v202
    %v507 = vunpack.c.h.b16 %v202
    %v508 = vunpack.c.l.b16 %v203
    %v509 = vunpack.c.h.b16 %v203
    %v510 = vunpack.c.l.b16 %v204
    %v511 = vunpack.c.h.b16 %v204
    %v512 = vunpack.c.l.b16 %v205
    %v513 = vunpack.c.h.b16 %v205
    %v514 = vunpack.c.l.b16 %v206
    %v515 = vunpack.c.h.b16 %v206
    %v516 = vunpack.c.l.b16 %v207
    %v517 = vunpack.c.h.b16 %v207
    %v518 = vunpack.c.l.b16 %v208
    %v519 = vunpack.c.h.b16 %v208
    %v520 = vunpack.c.l.b16 %v209
    %v521 = vunpack.c.h.b16 %v209
    %v522 = vunpack.c.l.b16 %v210
    %v523 = vunpack.c.h.b16 %v210
    %v524 = vunpack.c.l.b16 %v211
    %v525 = vunpack.c.h.b16 %v211
    %v526 = vunpack.c.l.b16 %v212
    %v527 = vunpack.c.h.b16 %v212
    %v528 = vunpack.c.l.b16 %v213
    %v529 = vunpack.c.h.b16 %v213
    %v530 = vunpack.c.l.b16 %v214
    %v531 = vunpack.c.h.b16 %v214
    %v532 = vunpack.c.l.b16 %v215
    %v533 = vunpack.c.h.b16 %v215
    %v534 = vunpack.c.l.b16 %v216
    %v535 = vunpack.c.h.b16 %v216
    %v536 = vunpack.c.l.b16 %v217
    %v537 = vunpack.c.h.b16 %v217
    %v538 = vunpack.c.l.b16 %v218
    %v539 = vunpack.c.h.b16 %v218
    %v540 = vunpack.c.l.b16 %v219
    %v541 = vunpack.c.h.b16 %v219
    %v542 = vunpack.c.l.b16 %v220
    %v543 = vunpack.c.h.b16 %v220
    %v544 = vunpack.c.l.b16 %v221
    %v545 = vunpack.c.h.b16 %v221
    %v546 = vunpack.c.l.b16 %v222
    %v547 = vunpack.c.h.b16 %v222
    %v548 = vunpack.c.l.b16 %v223
    %v549 = vunpack.c.h.b16 %v223
    %v550 = vunpack.c.l.b16 %v224
    %v551 = vunpack.c.h.b16 %v224
    %v552 = vunpack.c.l.b16 %v225
    %v553 = vunpack.c.h.b16 %v225
    %v554 = vunpack.c.l.b16 %v226
    %v555 = vunpack.c.h.b16 %v226
    %v556 = vunpack.c.l.b16 %v227
    %v557 = vunpack.c.h.b16 %v227
    %v558 = vunpack.c.l.b16 %v228
    %v559 = vunpack.c.h.b16 %v228
    %v560 = vunpack.c.l.b16 %v229
    %v561 = vunpack.c.h.b16 %v229
    %v562 = vunpack.c.l.b16 %v230
    %v563 = vunpack.c.h.b16 %v230
    %v564 = vunpack.c.l.b16 %v231
    %v565 = vunpack.c.h.b16 %v231
    %v566 = vunpack.c.l.b16 %v232
    %v567 = vunpack.c.h.b16 %v232
    %v568 = vunpack.c.l.b16 %v233
    %v569 = vunpack.c.h.b16 %v233
    %v570 = vunpack.c.l.b16 %v234
    %v571 = vunpack.c.h.b16 %v234
    %v572 = vunpack.c.l.b16 %v235
    %v573 = vunpack.c.h.b16 %v235
    %v574 = vunpack.c.l.b16 %v236
    %v575 = vunpack.c.h.b16 %v236
    %v576 = vunpack.c.l.b16 %v237
    %v577 = vunpack.c.h.b16 %v237
    %v578 = vunpack.c.l.b16 %v238
    %v579 = vunpack.c.h.b16 %v238
    %v580 = vunpack.c.l.b16 %v239
    %v581 = vunpack.c.h.b16 %v239
    %v582 = vunpack.c.l.b16 %v240
    %v583 = vunpack.c.h.b16 %v240
    %v584 = vunpack.c.l.b16 %v241
    %v585 = vunpack.c.h.b16 %v241
    %v586 = vunpack.c.l.b16 %v242
    %v587 = vunpack.c.h.b16 %v242
    %v588 = vunpack.c.l.b16 %v243
    %v589 = vunpack.c.h.b16 %v243
    %v590 = vunpack.c.l.b16 %v244
    %v591 = vunpack.c.h.b16 %v244
    %v592 = vunpack.c.l.b16 %v245
    %v593 = vunpack.c.h.b16 %v245
    %v594 = vunpack.c.l.b16 %v246
    %v595 = vunpack.c.h.b16 %v246
    %v596 = vunpack.c.l.b16 %v247
    %v597 = vunpack.c.h.b16 %v247
    %v598 = vunpack.c.l.b16 %v248
    %v599 = vunpack.c.h.b16 %v248
    %v600 = vunpack.c.l.b16 %v249
    %v601 = vunpack.c.h.b16 %v249
    %v602 = vunpack.c.l.b16 %v250
    %v603 = vunpack.c.h.b16 %v250
    %v604 = vunpack.c.l.b16 %v251
    %v605 = vunpack.c.h.b16 %v251
    %v606 = vunpack.c.l.b16 %v252
    %v607 = vunpack.c.h.b16 %v252
    %v608 = vunpack.c.l.b16 %v253
    %v609 = vunpack.c.h.b16 %v253
    %v610 = vunpack.c.l.b16 %v254
    %v611 = vunpack.c.h.b16 %v254
    %v612 = vunpack.c.l.b16 %v255
    %v613 = vunpack.c.h.b16 %v255
    %v614 = vunpack.c.l.b16 %v256
    %v615 = vunpack.c.h.b16 %v256
    %v616 = vunpack.c.l.b16 %v257
    %v617 = vunpack.c.h.b16 %v257
    %v618 = vunpack.c.l.b16 %v258
    %v619 = vunpack.c.h.b16 %v258
    %v620 = vunpack.c.l.b16 %v259
    %v621 = vunpack.c.h.b16 %v259
    %v622 = vunpack.c.l.b16 %v260
    %v623 = vunpack.c.h.b16 %v260
    %v624 = vunpack.c.l.b16 %v261
    %v625 = vunpack.c.h.b16 %v261
    %v626 = vunpack.c.l.b16 %v262
    %v627 = vunpack.c.h.b16 %v262
    %v628 = vunpack.c.l.b16 %v263
    %v629 = vunpack.c.h.b16 %v263
    %v630 = vunpack.c.l.b16 %v264
    %v631 = vunpack.c.h.b16 %v264
    %v632 = vunpack.c.l.b16 %v265
    %v633 = vunpack.c.h.b16 %v265
    %v634 = vunpack.c.l.b16 %v266
    %v635 = vunpack.c.h.b16 %v266
    %v636 = vunpack.c.l.b16 %v267
    %v637 = vunpack.c.h.b16 %v267
    %v638 = vunpack.c.l.b16 %v268
    %v639 = vunpack.c.h.b16 %v268
    %v640 = vunpack.c.l.b16 %v269
    %v641 = vunpack.c.h.b16 %v269
    %v642 = vunpack.c.l.b16 %v270
    %v643 = vunpack.c.h.b16 %v270
    %v644 = vunpack.c.l.b16 %v271
    %v645 = vunpack.c.h.b16 %v271
    %v646 = vunpack.c.l.b16 %v272
    %v647 = vunpack.c.h.b16 %v272
    %v648 = vunpack.c.l.b16 %v273
    %v649 = vunpack.c.h.b16 %v273
    %v650 = vunpack.c.l.b16 %v274
    %v651 = vunpack.c.h.b16 %v274
    %v652 = vunpack.c.l.b16 %v275
    %v653 = vunpack.c.h.b16 %v275
    %v654 = vunpack.c.l.b16 %v276
    %v655 = vunpack.c.h.b16 %v276
    %v656 = vunpack.c.l.b16 %v277
    %v657 = vunpack.c.h.b16 %v277
    %v658 = vunpack.c.l.b16 %v278
    %v659 = vunpack.c.h.b16 %v278
    %v660 = vunpack.c.l.b16 %v279
    %v661 = vunpack.c.h.b16 %v279
    %v662 = vunpack.c.l.b16 %v280
    %v663 = vunpack.c.h.b16 %v280
    %v664 = vunpack.c.l.b16 %v281
    %v665 = vunpack.c.h.b16 %v281
    %v666 = vunpack.c.l.b16 %v282
    %v667 = vunpack.c.h.b16 %v282
    %v668 = vunpack.c.l.b16 %v283
    %v669 = vunpack.c.h.b16 %v283
    %v670 = vunpack.c.l.b16 %v284
    %v671 = vunpack.c.h.b16 %v284
    %v672 = vunpack.c.l.b16 %v285
    %v673 = vunpack.c.h.b16 %v285
    %v674 = vunpack.c.l.b16 %v286
    %v675 = vunpack.c.h.b16 %v286
    %v676 = vunpack.c.l.b16 %v287
    %v677 = vunpack.c.h.b16 %v287
    %v678 = vunpack.c.l.b16 %v288
    %v679 = vunpack.c.h.b16 %v288
    %v680 = vunpack.c.l.b16 %v289
    %v681 = vunpack.c.h.b16 %v289
    %v682 = vunpack.c.l.b16 %v290
    %v683 = vunpack.c.h.b16 %v290
    %v684 = vunpack.c.l.b16 %v291
    %v685 = vunpack.c.h.b16 %v291
    %v686 = vpack.c.b16 %v434, %v430
    %v687 = vpack.c.b16 %v435, %v431
    %v688 = vpack.c.b16 %v436, %v432
    %v689 = vpack.c.b16 %v437, %v433
    %v690 = vpack.c.b16 %v442, %v438
    %v691 = vpack.c.b16 %v443, %v439
    %v692 = vpack.c.b16 %v444, %v440
    %v693 = vpack.c.b16 %v445, %v441
    %v694 = vpack.c.b16 %v450, %v446
    %v695 = vpack.c.b16 %v451, %v447
    %v696 = vpack.c.b16 %v452, %v448
    %v697 = vpack.c.b16 %v453, %v449
    %v698 = vpack.c.b16 %v458, %v454
    %v699 = vpack.c.b16 %v459, %v455
    %v700 = vpack.c.b16 %v460, %v456
    %v701 = vpack.c.b16 %v461, %v457
    %v702 = vpack.c.b16 %v466, %v462
    %v703 = vpack.c.b16 %v467, %v463
    %v704 = vpack.c.b16 %v468, %v464
    %v705 = vpack.c.b16 %v469, %v465
    %v706 = vpack.c.b16 %v474, %v470
    %v707 = vpack.c.b16 %v475, %v471
    %v708 = vpack.c.b16 %v476, %v472
    %v709 = vpack.c.b16 %v477, %v473
    %v710 = vpack.c.b16 %v482, %v478
    %v711 = vpack.c.b16 %v483, %v479
    %v712 = vpack.c.b16 %v484, %v480
    %v713 = vpack.c.b16 %v485, %v481
    %v714 = vpack.c.b16 %v490, %v486
    %v715 = vpack.c.b16 %v491, %v487
    %v716 = vpack.c.b16 %v492, %v488
    %v717 = vpack.c.b16 %v493, %v489
    %v718 = vpack.c.b16 %v498, %v494
    %v719 = vpack.c.b16 %v499, %v495
    %v720 = vpack.c.b16 %v500, %v496
    %v721 = vpack.c.b16 %v501, %v497
    %v722 = vpack.c.b16 %v506, %v502
    %v723 = vpack.c.b16 %v507, %v503
    %v724 = vpack.c.b16 %v508, %v504
    %v725 = vpack.c.b16 %v509, %v505
    %v726 = vpack.c.b16 %v514, %v510
    %v727 = vpack.c.b16 %v515, %v511
    %v728 = vpack.c.b16 %v516, %v512
    %v729 = vpack.c.b16 %v517, %v513
    %v730 = vpack.c.b16 %v522, %v518
    %v731 = vpack.c.b16 %v523, %v519
    %v732 = vpack.c.b16 %v524, %v520
    %v733 = vpack.c.b16 %v525, %v521
    %v734 = vpack.c.b16 %v530, %v526
    %v735 = vpack.c.b16 %v531, %v527
    %v736 = vpack.c.b16 %v532, %v528
    %v737 = vpack.c.b16 %v533, %v529
    %v738 = vpack.c.b16 %v538, %v534
    %v739 = vpack.c.b16 %v539, %v535
    %v740 = vpack.c.b16 %v540, %v536
    %v741 = vpack.c.b16 %v541, %v537
    %v742 = vpack.c.b16 %v546, %v542
    %v743 = vpack.c.b16 %v547, %v543
    %v744 = vpack.c.b16 %v548, %v544
    %v745 = vpack.c.b16 %v549, %v545
    %v746 = vpack.c.b16 %v554, %v550
    %v747 = vpack.c.b16 %v555, %v551
    %v748 = vpack.c.b16 %v556, %v552
    %v749 = vpack.c.b16 %v557, %v553
    %v750 = vpack.c.b16 %v562, %v558
    %v751 = vpack.c.b16 %v563, %v559
    %v752 = vpack.c.b16 %v564, %v560
    %v753 = vpack.c.b16 %v565, %v561
    %v754 = vpack.c.b16 %v570, %v566
    %v755 = vpack.c.b16 %v571, %v567
    %v756 = vpack.c.b16 %v572, %v568
    %v757 = vpack.c.b16 %v573, %v569
    %v758 = vpack.c.b16 %v578, %v574
    %v759 = vpack.c.b16 %v579, %v575
    %v760 = vpack.c.b16 %v580, %v576
    %v761 = vpack.c.b16 %v581, %v577
    %v762 = vpack.c.b16 %v586, %v582
    %v763 = vpack.c.b16 %v587, %v583
    %v764 = vpack.c.b16 %v588, %v584
    %v765 = vpack.c.b16 %v589, %v585
    %v766 = vpack.c.b16 %v594, %v590
    %v767 = vpack.c.b16 %v595, %v591
    %v768 = vpack.c.b16 %v596, %v592
    %v769 = vpack.c.b16 %v597, %v593
    %v770 = vpack.c.b16 %v602, %v598
    %v771 = vpack.c.b16 %v603, %v599
    %v772 = vpack.c.b16 %v604, %v600
    %v773 = vpack.c.b16 %v605, %v601
    %v774 = vpack.c.b16 %v610, %v606
    %v775 = vpack.c.b16 %v611, %v607
    %v776 = vpack.c.b16 %v612, %v608
    %v777 = vpack.c.b16 %v613, %v609
    %v778 = vpack.c.b16 %v618, %v614
    %v779 = vpack.c.b16 %v619, %v615
    %v780 = vpack.c.b16 %v620, %v616
    %v781 = vpack.c.b16 %v621, %v617
    %v782 = vpack.c.b16 %v626, %v622
    %v783 = vpack.c.b16 %v627, %v623
    %v784 = vpack.c.b16 %v628, %v624
    %v785 = vpack.c.b16 %v629, %v625
    %v786 = vpack.c.b16 %v634, %v630
    %v787 = vpack.c.b16 %v635, %v631
    %v788 = vpack.c.b16 %v636, %v632
    %v789 = vpack.c.b16 %v637, %v633
    %v790 = vpack.c.b16 %v642, %v638
    %v791 = vpack.c.b16 %v643, %v639
    %v792 = vpack.c.b16 %v644, %v640
    %v793 = vpack.c.b16 %v645, %v641
    %v794 = vpack.c.b16 %v650, %v646
    %v795 = vpack.c.b16 %v651, %v647
    %v796 = vpack.c.b16 %v652, %v648
    %v797 = vpack.c.b16 %v653, %v649
    %v798 = vpack.c.b16 %v658, %v654
    %v799 = vpack.c.b16 %v659, %v655
    %v800 = vpack.c.b16 %v660, %v656
    %v801 = vpack.c.b16 %v661, %v657
    %v802 = vpack.c.b16 %v666, %v662
    %v803 = vpack.c.b16 %v667, %v663
    %v804 = vpack.c.b16 %v668, %v664
    %v805 = vpack.c.b16 %v669, %v665
    %v806 = vpack.c.b16 %v674, %v670
    %v807 = vpack.c.b16 %v675, %v671
    %v808 = vpack.c.b16 %v676, %v672
    %v809 = vpack.c.b16 %v677, %v673
    %v810 = vpack.c.b16 %v682, %v678
    %v811 = vpack.c.b16 %v683, %v679
    %v812 = vpack.c.b16 %v684, %v680
    %v813 = vpack.c.b16 %v685, %v681
    %942 = vmatpush.bf16.msra.mxu0 %v714
    %943 = vmatpush.bf16.msra.mxu0 %v710
    %944 = vmatpush.bf16.msra.mxu0 %v706
    %945 = vmatpush.bf16.msra.mxu0 %v702
    %946 = vmatpush.bf16.msra.mxu0 %v698
    %947 = vmatpush.bf16.msra.mxu0 %v694
    %948 = vmatpush.bf16.msra.mxu0 %v690
    %949 = vmatpush.bf16.msra.mxu0 %v686
    %950 = vmatmul.bf16.gmra.mxu0 %v160
    %v951 = vpop.f32.mrf.mxu0
    %v952 = vadd.f32 %v294, %v951
    %v953 = vpop.f32.mrf.mxu0
    %v954 = vadd.f32 %v294, %v953
    %955 = vdwg.mxu0
    %956 = vmatpush.bf16.msra.mxu0 %v746
    %957 = vmatpush.bf16.msra.mxu0 %v742
    %958 = vmatpush.bf16.msra.mxu0 %v738
    %959 = vmatpush.bf16.msra.mxu0 %v734
    %960 = vmatpush.bf16.msra.mxu0 %v730
    %961 = vmatpush.bf16.msra.mxu0 %v726
    %962 = vmatpush.bf16.msra.mxu0 %v722
    %963 = vmatpush.bf16.msra.mxu0 %v718
    %964 = vmatmul.bf16.gmra.mxu0 %v161
    %v965 = vpop.f32.mrf.mxu0
    %v966 = vadd.f32 %v952, %v965
    %v967 = vpop.f32.mrf.mxu0
    %v968 = vadd.f32 %v954, %v967
    %969 = vdwg.mxu0
    %970 = vmatpush.bf16.msra.mxu0 %v778
    %971 = vmatpush.bf16.msra.mxu0 %v774
    %972 = vmatpush.bf16.msra.mxu0 %v770
    %973 = vmatpush.bf16.msra.mxu0 %v766
    %974 = vmatpush.bf16.msra.mxu0 %v762
    %975 = vmatpush.bf16.msra.mxu0 %v758
    %976 = vmatpush.bf16.msra.mxu0 %v754
    %977 = vmatpush.bf16.msra.mxu0 %v750
    %978 = vmatmul.bf16.gmra.mxu0 %v162
    %v979 = vpop.f32.mrf.mxu0
    %v980 = vadd.f32 %v966, %v979
    %v981 = vpop.f32.mrf.mxu0
    %v982 = vadd.f32 %v968, %v981
    %983 = vdwg.mxu0
    %984 = vmatpush.bf16.msra.mxu0 %v810
    %985 = vmatpush.bf16.msra.mxu0 %v806
    %986 = vmatpush.bf16.msra.mxu0 %v802
    %987 = vmatpush.bf16.msra.mxu0 %v798
    %988 = vmatpush.bf16.msra.mxu0 %v794
    %989 = vmatpush.bf16.msra.mxu0 %v790
    %990 = vmatpush.bf16.msra.mxu0 %v786
    %991 = vmatpush.bf16.msra.mxu0 %v782
    %992 = vmatmul.bf16.gmra.mxu0 %v163
    %v993 = vpop.f32.mrf.mxu0
    %v994 = vadd.f32 %v980, %v993
    %v995 = vpop.f32.mrf.mxu0
    %v996 = vadd.f32 %v982, %v995
    %997 = vdwg.mxu0
    %998 = vmatpush.bf16.msra.mxu0 %v715
    %999 = vmatpush.bf16.msra.mxu0 %v711
    %1000 = vmatpush.bf16.msra.mxu0 %v707
    %1001 = vmatpush.bf16.msra.mxu0 %v703
    %1002 = vmatpush.bf16.msra.mxu0 %v699
    %1003 = vmatpush.bf16.msra.mxu0 %v695
    %1004 = vmatpush.bf16.msra.mxu0 %v691
    %1005 = vmatpush.bf16.msra.mxu0 %v687
    %1006 = vmatmul.bf16.gmra.mxu0 %v160
    %v1007 = vpop.f32.mrf.mxu0
    %v1008 = vadd.f32 %v295, %v1007
    %v1009 = vpop.f32.mrf.mxu0
    %v1010 = vadd.f32 %v295, %v1009
    %1011 = vdwg.mxu0
    %1012 = vmatpush.bf16.msra.mxu0 %v747
    %1013 = vmatpush.bf16.msra.mxu0 %v743
    %1014 = vmatpush.bf16.msra.mxu0 %v739
    %1015 = vmatpush.bf16.msra.mxu0 %v735
    %1016 = vmatpush.bf16.msra.mxu0 %v731
    %1017 = vmatpush.bf16.msra.mxu0 %v727
    %1018 = vmatpush.bf16.msra.mxu0 %v723
    %1019 = vmatpush.bf16.msra.mxu0 %v719
    %1020 = vmatmul.bf16.gmra.mxu0 %v161
    %v1021 = vpop.f32.mrf.mxu0
    %v1022 = vadd.f32 %v1008, %v1021
    %v1023 = vpop.f32.mrf.mxu0
    %v1024 = vadd.f32 %v1010, %v1023
    %1025 = vdwg.mxu0
    %1026 = vmatpush.bf16.msra.mxu0 %v779
    %1027 = vmatpush.bf16.msra.mxu0 %v775
    %1028 = vmatpush.bf16.msra.mxu0 %v771
    %1029 = vmatpush.bf16.msra.mxu0 %v767
    %1030 = vmatpush.bf16.msra.mxu0 %v763
    %1031 = vmatpush.bf16.msra.mxu0 %v759
    %1032 = vmatpush.bf16.msra.mxu0 %v755
    %1033 = vmatpush.bf16.msra.mxu0 %v751
    %1034 = vmatmul.bf16.gmra.mxu0 %v162
    %v1035 = vpop.f32.mrf.mxu0
    %v1036 = vadd.f32 %v1022, %v1035
    %v1037 = vpop.f32.mrf.mxu0
    %v1038 = vadd.f32 %v1024, %v1037
    %1039 = vdwg.mxu0
    %1040 = vmatpush.bf16.msra.mxu0 %v811
    %1041 = vmatpush.bf16.msra.mxu0 %v807
    %1042 = vmatpush.bf16.msra.mxu0 %v803
    %1043 = vmatpush.bf16.msra.mxu0 %v799
    %1044 = vmatpush.bf16.msra.mxu0 %v795
    %1045 = vmatpush.bf16.msra.mxu0 %v791
    %1046 = vmatpush.bf16.msra.mxu0 %v787
    %1047 = vmatpush.bf16.msra.mxu0 %v783
    %1048 = vmatmul.bf16.gmra.mxu0 %v163
    %v1049 = vpop.f32.mrf.mxu0
    %v1050 = vadd.f32 %v1036, %v1049
    %v1051 = vpop.f32.mrf.mxu0
    %v1052 = vadd.f32 %v1038, %v1051
    %1053 = vdwg.mxu0
    %1054 = vmatpush.bf16.msra.mxu0 %v716
    %1055 = vmatpush.bf16.msra.mxu0 %v712
    %1056 = vmatpush.bf16.msra.mxu0 %v708
    %1057 = vmatpush.bf16.msra.mxu0 %v704
    %1058 = vmatpush.bf16.msra.mxu0 %v700
    %1059 = vmatpush.bf16.msra.mxu0 %v696
    %1060 = vmatpush.bf16.msra.mxu0 %v692
    %1061 = vmatpush.bf16.msra.mxu0 %v688
    %1062 = vmatmul.bf16.gmra.mxu0 %v160
    %v1063 = vpop.f32.mrf.mxu0
    %v1064 = vadd.f32 %v296, %v1063
    %v1065 = vpop.f32.mrf.mxu0
    %v1066 = vadd.f32 %v296, %v1065
    %1067 = vdwg.mxu0
    %1068 = vmatpush.bf16.msra.mxu0 %v748
    %1069 = vmatpush.bf16.msra.mxu0 %v744
    %1070 = vmatpush.bf16.msra.mxu0 %v740
    %1071 = vmatpush.bf16.msra.mxu0 %v736
    %1072 = vmatpush.bf16.msra.mxu0 %v732
    %1073 = vmatpush.bf16.msra.mxu0 %v728
    %1074 = vmatpush.bf16.msra.mxu0 %v724
    %1075 = vmatpush.bf16.msra.mxu0 %v720
    %1076 = vmatmul.bf16.gmra.mxu0 %v161
    %v1077 = vpop.f32.mrf.mxu0
    %v1078 = vadd.f32 %v1064, %v1077
    %v1079 = vpop.f32.mrf.mxu0
    %v1080 = vadd.f32 %v1066, %v1079
    %1081 = vdwg.mxu0
    %1082 = vmatpush.bf16.msra.mxu0 %v780
    %1083 = vmatpush.bf16.msra.mxu0 %v776
    %1084 = vmatpush.bf16.msra.mxu0 %v772
    %1085 = vmatpush.bf16.msra.mxu0 %v768
    %1086 = vmatpush.bf16.msra.mxu0 %v764
    %1087 = vmatpush.bf16.msra.mxu0 %v760
    %1088 = vmatpush.bf16.msra.mxu0 %v756
    %1089 = vmatpush.bf16.msra.mxu0 %v752
    %1090 = vmatmul.bf16.gmra.mxu0 %v162
    %v1091 = vpop.f32.mrf.mxu0
    %v1092 = vadd.f32 %v1078, %v1091
    %v1093 = vpop.f32.mrf.mxu0
    %v1094 = vadd.f32 %v1080, %v1093
    %1095 = vdwg.mxu0
    %1096 = vmatpush.bf16.msra.mxu0 %v812
    %1097 = vmatpush.bf16.msra.mxu0 %v808
    %1098 = vmatpush.bf16.msra.mxu0 %v804
    %1099 = vmatpush.bf16.msra.mxu0 %v800
    %1100 = vmatpush.bf16.msra.mxu0 %v796
    %1101 = vmatpush.bf16.msra.mxu0 %v792
    %1102 = vmatpush.bf16.msra.mxu0 %v788
    %1103 = vmatpush.bf16.msra.mxu0 %v784
    %1104 = vmatmul.bf16.gmra.mxu0 %v163
    %v1105 = vpop.f32.mrf.mxu0
    %v1106 = vadd.f32 %v1092, %v1105
    %v1107 = vpop.f32.mrf.mxu0
    %v1108 = vadd.f32 %v1094, %v1107
    %1109 = vdwg.mxu0
    %1110 = vmatpush.bf16.msra.mxu0 %v717
    %1111 = vmatpush.bf16.msra.mxu0 %v713
    %1112 = vmatpush.bf16.msra.mxu0 %v709
    %1113 = vmatpush.bf16.msra.mxu0 %v705
    %1114 = vmatpush.bf16.msra.mxu0 %v701
    %1115 = vmatpush.bf16.msra.mxu0 %v697
    %1116 = vmatpush.bf16.msra.mxu0 %v693
    %1117 = vmatpush.bf16.msra.mxu0 %v689
    %1118 = vmatmul.bf16.gmra.mxu0 %v160
    %v1119 = vpop.f32.mrf.mxu0
    %v1120 = vadd.f32 %v297, %v1119
    %v1121 = vpop.f32.mrf.mxu0
    %v1122 = vadd.f32 %v297, %v1121
    %1123 = vdwg.mxu0
    %1124 = vmatpush.bf16.msra.mxu0 %v749
    %1125 = vmatpush.bf16.msra.mxu0 %v745
    %1126 = vmatpush.bf16.msra.mxu0 %v741
    %1127 = vmatpush.bf16.msra.mxu0 %v737
    %1128 = vmatpush.bf16.msra.mxu0 %v733
    %1129 = vmatpush.bf16.msra.mxu0 %v729
    %1130 = vmatpush.bf16.msra.mxu0 %v725
    %1131 = vmatpush.bf16.msra.mxu0 %v721
    %1132 = vmatmul.bf16.gmra.mxu0 %v161
    %v1133 = vpop.f32.mrf.mxu0
    %v1134 = vadd.f32 %v1120, %v1133
    %v1135 = vpop.f32.mrf.mxu0
    %v1136 = vadd.f32 %v1122, %v1135
    %1137 = vdwg.mxu0
    %1138 = vmatpush.bf16.msra.mxu0 %v781
    %1139 = vmatpush.bf16.msra.mxu0 %v777
    %1140 = vmatpush.bf16.msra.mxu0 %v773
    %1141 = vmatpush.bf16.msra.mxu0 %v769
    %1142 = vmatpush.bf16.msra.mxu0 %v765
    %1143 = vmatpush.bf16.msra.mxu0 %v761
    %1144 = vmatpush.bf16.msra.mxu0 %v757
    %1145 = vmatpush.bf16.msra.mxu0 %v753
    %1146 = vmatmul.bf16.gmra.mxu0 %v162
    %v1147 = vpop.f32.mrf.mxu0
    %v1148 = vadd.f32 %v1134, %v1147
    %v1149 = vpop.f32.mrf.mxu0
    %v1150 = vadd.f32 %v1136, %v1149
    %1151 = vdwg.mxu0
    %1152 = vmatpush.bf16.msra.mxu0 %v813
    %1153 = vmatpush.bf16.msra.mxu0 %v809
    %1154 = vmatpush.bf16.msra.mxu0 %v805
    %1155 = vmatpush.bf16.msra.mxu0 %v801
    %1156 = vmatpush.bf16.msra.mxu0 %v797
    %1157 = vmatpush.bf16.msra.mxu0 %v793
    %1158 = vmatpush.bf16.msra.mxu0 %v789
    %1159 = vmatpush.bf16.msra.mxu0 %v785
    %1160 = vmatmul.bf16.gmra.mxu0 %v163
    %v1161 = vpop.f32.mrf.mxu0
    %v1162 = vadd.f32 %v1148, %v1161
    %v1163 = vpop.f32.mrf.mxu0
    %v1164 = vadd.f32 %v1150, %v1163
    %1165 = vdwg.mxu0
    %v1166 = vmax.f32 %v994, 0.0
    %v1167 = vmax.f32 %v1050, 0.0
    %v1168 = vmax.f32 %v1106, 0.0
    %v1169 = vmax.f32 %v1162, 0.0
    %v1170 = vmax.f32 %v996, 0.0
    %v1171 = vmax.f32 %v1052, 0.0
    %v1172 = vmax.f32 %v1108, 0.0
    %v1173 = vmax.f32 %v1164, 0.0
    %v1174 = vpack.c.bf16 %v1170, %v1166
    %v1175 = vpack.c.bf16 %v1171, %v1167
    %v1176 = vpack.c.bf16 %v1172, %v1168
    %v1177 = vpack.c.bf16 %v1173, %v1169
    %v1178 = vld [vmem:[%s5] sm:$0xf]
    %v1179 = vld [vmem:[%s5 + $0x4] sm:$0xf]
    %v1180 = vld [vmem:[%s5 + $0x8] sm:$0xf]
    %v1181 = vld [vmem:[%s5 + $0xc] sm:$0xf]
    %v1182 = vld [vmem:[%s5 + $0x10] sm:$0xf]
    %v1183 = vld [vmem:[%s5 + $0x14] sm:$0xf]
    %v1184 = vld [vmem:[%s5 + $0x18] sm:$0xf]
    %v1185 = vld [vmem:[%s5 + $0x1c] sm:$0xf]
    %v1186 = vld [vmem:[%s5 + $0x20] sm:$0xf]
    %v1187 = vld [vmem:[%s5 + $0x24] sm:$0xf]
    %v1188 = vld [vmem:[%s5 + $0x28] sm:$0xf]
    %v1189 = vld [vmem:[%s5 + $0x2c] sm:$0xf]
    %v1190 = vld [vmem:[%s5 + $0x30] sm:$0xf]
    %v1191 = vld [vmem:[%s5 + $0x34] sm:$0xf]
    %v1192 = vld [vmem:[%s5 + $0x38] sm:$0xf]
    %v1193 = vld [vmem:[%s5 + $0x3c] sm:$0xf]
    %v1194 = vld [vmem:[%s5 + $0x40] sm:$0xf]
    %v1195 = vld [vmem:[%s5 + $0x44] sm:$0xf]
    %v1196 = vld [vmem:[%s5 + $0x48] sm:$0xf]
    %v1197 = vld [vmem:[%s5 + $0x4c] sm:$0xf]
    %v1198 = vld [vmem:[%s5 + $0x50] sm:$0xf]
    %v1199 = vld [vmem:[%s5 + $0x54] sm:$0xf]
    %v1200 = vld [vmem:[%s5 + $0x58] sm:$0xf]
    %v1201 = vld [vmem:[%s5 + $0x5c] sm:$0xf]
    %v1202 = vld [vmem:[%s5 + $0x60] sm:$0xf]
    %v1203 = vld [vmem:[%s5 + $0x64] sm:$0xf]
    %v1204 = vld [vmem:[%s5 + $0x68] sm:$0xf]
    %v1205 = vld [vmem:[%s5 + $0x6c] sm:$0xf]
    %v1206 = vld [vmem:[%s5 + $0x70] sm:$0xf]
    %v1207 = vld [vmem:[%s5 + $0x74] sm:$0xf]
    %v1208 = vld [vmem:[%s5 + $0x78] sm:$0xf]
    %v1209 = vld [vmem:[%s5 + $0x7c] sm:$0xf]
    %v1210 = vld [vmem:[%s5 + $0x80] sm:$0xf]
    %v1211 = vld [vmem:[%s5 + $0x84] sm:$0xf]
    %v1212 = vld [vmem:[%s5 + $0x88] sm:$0xf]
    %v1213 = vld [vmem:[%s5 + $0x8c] sm:$0xf]
    %v1214 = vld [vmem:[%s5 + $0x90] sm:$0xf]
    %v1215 = vld [vmem:[%s5 + $0x94] sm:$0xf]
    %v1216 = vld [vmem:[%s5 + $0x98] sm:$0xf]
    %v1217 = vld [vmem:[%s5 + $0x9c] sm:$0xf]
    %v1218 = vld [vmem:[%s5 + $0xa0] sm:$0xf]
    %v1219 = vld [vmem:[%s5 + $0xa4] sm:$0xf]
    %v1220 = vld [vmem:[%s5 + $0xa8] sm:$0xf]
    %v1221 = vld [vmem:[%s5 + $0xac] sm:$0xf]
    %v1222 = vld [vmem:[%s5 + $0xb0] sm:$0xf]
    %v1223 = vld [vmem:[%s5 + $0xb4] sm:$0xf]
    %v1224 = vld [vmem:[%s5 + $0xb8] sm:$0xf]
    %v1225 = vld [vmem:[%s5 + $0xbc] sm:$0xf]
    %v1226 = vld [vmem:[%s5 + $0xc0] sm:$0xf]
    %v1227 = vld [vmem:[%s5 + $0xc4] sm:$0xf]
    %v1228 = vld [vmem:[%s5 + $0xc8] sm:$0xf]
    %v1229 = vld [vmem:[%s5 + $0xcc] sm:$0xf]
    %v1230 = vld [vmem:[%s5 + $0xd0] sm:$0xf]
    %v1231 = vld [vmem:[%s5 + $0xd4] sm:$0xf]
    %v1232 = vld [vmem:[%s5 + $0xd8] sm:$0xf]
    %v1233 = vld [vmem:[%s5 + $0xdc] sm:$0xf]
    %v1234 = vld [vmem:[%s5 + $0xe0] sm:$0xf]
    %v1235 = vld [vmem:[%s5 + $0xe4] sm:$0xf]
    %v1236 = vld [vmem:[%s5 + $0xe8] sm:$0xf]
    %v1237 = vld [vmem:[%s5 + $0xec] sm:$0xf]
    %v1238 = vld [vmem:[%s5 + $0xf0] sm:$0xf]
    %v1239 = vld [vmem:[%s5 + $0xf4] sm:$0xf]
    %v1240 = vld [vmem:[%s5 + $0xf8] sm:$0xf]
    %v1241 = vld [vmem:[%s5 + $0xfc] sm:$0xf]
    %v1242 = vld [vmem:[%s6] sm:$0x1]
    %v1244 = vperm.slane %v1242, 0
    %v1310 = vunpack.c.l.b16 %v1178
    %v1311 = vunpack.c.l.b16 %v1179
    %v1312 = vunpack.c.l.b16 %v1180
    %v1313 = vunpack.c.l.b16 %v1181
    %v1314 = vunpack.c.l.b16 %v1182
    %v1315 = vunpack.c.l.b16 %v1183
    %v1316 = vunpack.c.l.b16 %v1184
    %v1317 = vunpack.c.l.b16 %v1185
    %v1318 = vunpack.c.l.b16 %v1186
    %v1319 = vunpack.c.l.b16 %v1187
    %v1320 = vunpack.c.l.b16 %v1188
    %v1321 = vunpack.c.l.b16 %v1189
    %v1322 = vunpack.c.l.b16 %v1190
    %v1323 = vunpack.c.l.b16 %v1191
    %v1324 = vunpack.c.l.b16 %v1192
    %v1325 = vunpack.c.l.b16 %v1193
    %v1326 = vunpack.c.l.b16 %v1194
    %v1327 = vunpack.c.l.b16 %v1195
    %v1328 = vunpack.c.l.b16 %v1196
    %v1329 = vunpack.c.l.b16 %v1197
    %v1330 = vunpack.c.l.b16 %v1198
    %v1331 = vunpack.c.l.b16 %v1199
    %v1332 = vunpack.c.l.b16 %v1200
    %v1333 = vunpack.c.l.b16 %v1201
    %v1334 = vunpack.c.l.b16 %v1202
    %v1335 = vunpack.c.l.b16 %v1203
    %v1336 = vunpack.c.l.b16 %v1204
    %v1337 = vunpack.c.l.b16 %v1205
    %v1338 = vunpack.c.l.b16 %v1206
    %v1339 = vunpack.c.l.b16 %v1207
    %v1340 = vunpack.c.l.b16 %v1208
    %v1341 = vunpack.c.l.b16 %v1209
    %v1342 = vunpack.c.l.b16 %v1210
    %v1343 = vunpack.c.l.b16 %v1211
    %v1344 = vunpack.c.l.b16 %v1212
    %v1345 = vunpack.c.l.b16 %v1213
    %v1346 = vunpack.c.l.b16 %v1214
    %v1347 = vunpack.c.l.b16 %v1215
    %v1348 = vunpack.c.l.b16 %v1216
    %v1349 = vunpack.c.l.b16 %v1217
    %v1350 = vunpack.c.l.b16 %v1218
    %v1351 = vunpack.c.l.b16 %v1219
    %v1352 = vunpack.c.l.b16 %v1220
    %v1353 = vunpack.c.l.b16 %v1221
    %v1354 = vunpack.c.l.b16 %v1222
    %v1355 = vunpack.c.l.b16 %v1223
    %v1356 = vunpack.c.l.b16 %v1224
    %v1357 = vunpack.c.l.b16 %v1225
    %v1358 = vunpack.c.l.b16 %v1226
    %v1359 = vunpack.c.l.b16 %v1227
    %v1360 = vunpack.c.l.b16 %v1228
    %v1361 = vunpack.c.l.b16 %v1229
    %v1362 = vunpack.c.l.b16 %v1230
    %v1363 = vunpack.c.l.b16 %v1231
    %v1364 = vunpack.c.l.b16 %v1232
    %v1365 = vunpack.c.l.b16 %v1233
    %v1366 = vunpack.c.l.b16 %v1234
    %v1367 = vunpack.c.l.b16 %v1235
    %v1368 = vunpack.c.l.b16 %v1236
    %v1369 = vunpack.c.l.b16 %v1237
    %v1370 = vunpack.c.l.b16 %v1238
    %v1371 = vunpack.c.l.b16 %v1239
    %v1372 = vunpack.c.l.b16 %v1240
    %v1373 = vunpack.c.l.b16 %v1241
    %v1374 = vpack.c.b16 %v1311, %v1310
    %v1375 = vpack.c.b16 %v1313, %v1312
    %v1376 = vpack.c.b16 %v1315, %v1314
    %v1377 = vpack.c.b16 %v1317, %v1316
    %v1378 = vpack.c.b16 %v1319, %v1318
    %v1379 = vpack.c.b16 %v1321, %v1320
    %v1380 = vpack.c.b16 %v1323, %v1322
    %v1381 = vpack.c.b16 %v1325, %v1324
    %v1382 = vpack.c.b16 %v1327, %v1326
    %v1383 = vpack.c.b16 %v1329, %v1328
    %v1384 = vpack.c.b16 %v1331, %v1330
    %v1385 = vpack.c.b16 %v1333, %v1332
    %v1386 = vpack.c.b16 %v1335, %v1334
    %v1387 = vpack.c.b16 %v1337, %v1336
    %v1388 = vpack.c.b16 %v1339, %v1338
    %v1389 = vpack.c.b16 %v1341, %v1340
    %v1390 = vpack.c.b16 %v1343, %v1342
    %v1391 = vpack.c.b16 %v1345, %v1344
    %v1392 = vpack.c.b16 %v1347, %v1346
    %v1393 = vpack.c.b16 %v1349, %v1348
    %v1394 = vpack.c.b16 %v1351, %v1350
    %v1395 = vpack.c.b16 %v1353, %v1352
    %v1396 = vpack.c.b16 %v1355, %v1354
    %v1397 = vpack.c.b16 %v1357, %v1356
    %v1398 = vpack.c.b16 %v1359, %v1358
    %v1399 = vpack.c.b16 %v1361, %v1360
    %v1400 = vpack.c.b16 %v1363, %v1362
    %v1401 = vpack.c.b16 %v1365, %v1364
    %v1402 = vpack.c.b16 %v1367, %v1366
    %v1403 = vpack.c.b16 %v1369, %v1368
    %v1404 = vpack.c.b16 %v1371, %v1370
    %v1405 = vpack.c.b16 %v1373, %v1372
    %1438 = vmatpush.bf16.msra.mxu0 %v1381
    %1439 = vmatpush.bf16.msra.mxu0 %v1380
    %1440 = vmatpush.bf16.msra.mxu0 %v1379
    %1441 = vmatpush.bf16.msra.mxu0 %v1378
    %1442 = vmatpush.bf16.msra.mxu0 %v1377
    %1443 = vmatpush.bf16.msra.mxu0 %v1376
    %1444 = vmatpush.bf16.msra.mxu0 %v1375
    %1445 = vmatpush.bf16.msra.mxu0 %v1374
    %1446 = vmatmul.bf16.gmra.mxu0 %v1174
    %v1447 = vpop.f32.mrf.mxu0
    %v1448 = vadd.f32 %v1244, %v1447
    %v1449 = vpop.f32.mrf.mxu0
    %v1450 = vadd.f32 %v1244, %v1449
    %1451 = vdwg.mxu0
    %1452 = vmatpush.bf16.msra.mxu0 %v1389
    %1453 = vmatpush.bf16.msra.mxu0 %v1388
    %1454 = vmatpush.bf16.msra.mxu0 %v1387
    %1455 = vmatpush.bf16.msra.mxu0 %v1386
    %1456 = vmatpush.bf16.msra.mxu0 %v1385
    %1457 = vmatpush.bf16.msra.mxu0 %v1384
    %1458 = vmatpush.bf16.msra.mxu0 %v1383
    %1459 = vmatpush.bf16.msra.mxu0 %v1382
    %1460 = vmatmul.bf16.gmra.mxu0 %v1175
    %v1461 = vpop.f32.mrf.mxu0
    %v1462 = vadd.f32 %v1448, %v1461
    %v1463 = vpop.f32.mrf.mxu0
    %v1464 = vadd.f32 %v1450, %v1463
    %1465 = vdwg.mxu0
    %1466 = vmatpush.bf16.msra.mxu0 %v1397
    %1467 = vmatpush.bf16.msra.mxu0 %v1396
    %1468 = vmatpush.bf16.msra.mxu0 %v1395
    %1469 = vmatpush.bf16.msra.mxu0 %v1394
    %1470 = vmatpush.bf16.msra.mxu0 %v1393
    %1471 = vmatpush.bf16.msra.mxu0 %v1392
    %1472 = vmatpush.bf16.msra.mxu0 %v1391
    %1473 = vmatpush.bf16.msra.mxu0 %v1390
    %1474 = vmatmul.bf16.gmra.mxu0 %v1176
    %v1475 = vpop.f32.mrf.mxu0
    %v1476 = vadd.f32 %v1462, %v1475
    %v1477 = vpop.f32.mrf.mxu0
    %v1478 = vadd.f32 %v1464, %v1477
    %1479 = vdwg.mxu0
    %1480 = vmatpush.bf16.msra.mxu0 %v1405
    %1481 = vmatpush.bf16.msra.mxu0 %v1404
    %1482 = vmatpush.bf16.msra.mxu0 %v1403
    %1483 = vmatpush.bf16.msra.mxu0 %v1402
    %1484 = vmatpush.bf16.msra.mxu0 %v1401
    %1485 = vmatpush.bf16.msra.mxu0 %v1400
    %1486 = vmatpush.bf16.msra.mxu0 %v1399
    %1487 = vmatpush.bf16.msra.mxu0 %v1398
    %1488 = vmatmul.bf16.gmra.mxu0 %v1177
    %v1489 = vpop.f32.mrf.mxu0
    %v1490 = vadd.f32 %v1476, %v1489
    %v1491 = vpop.f32.mrf.mxu0
    %v1492 = vadd.f32 %v1478, %v1491
    %1493 = vdwg.mxu0
    %v1494 = vmax.f32 %v1490, 0.0
    %v1495 = vmax.f32 %v1492, 0.0
    %v1496 = vld [vmem:[%s7] sm:$0x1]
    %v1497 = vpack.c.bf16 %v1495, %v1494
    %s1498 = sld [smem:[#allocation2]]
    %v1499 = vstv %s1498
    %vm1500 = vcmask 523264
    %v1502 = vsel %vm1500, %v1496, 0
    %v1505 = vsel %vm1500, %v1497, 0
    %1507 = vmatpush.bf16.xpose.msra.mxu0 0
    %1508 = vmatpush.bf16.xpose.msra.mxu0 0
    %1509 = vmatpush.bf16.xpose.msra.mxu0 0
    %1510 = vmatpush.bf16.xpose.msra.mxu0 0
    %1511 = vmatpush.bf16.xpose.msra.mxu0 0
    %1512 = vmatpush.bf16.xpose.msra.mxu0 0
    %1513 = vmatpush.bf16.xpose.msra.mxu0 0
    %1514 = vmatpush.bf16.xpose.msra.mxu0 %v1505
    %1515 = vmatmul.bf16.gmra.mxu0 %v1502
    %v1516 = vpop.f32.mrf.mxu0
    %v1517 = vadd.f32 %v1499, %v1516
    %v1518 = vpop.f32.mrf.mxu0
    %1519 = vdwg.mxu0
    %vm1520 = vcmask 122880
    %1521 = vst.msk [vmem:[#allocation6] sm:$0x1] %vm1520, %v1517
    // Predicated region
    $region42: #{tpu_custom_call.1} parent=1 // pred_check
      _
    $region43: #{tpu_custom_call.1} parent=1 // pred_check_branch
      %1523 = sbr.rel (0) target = $region45
    $region44: #{tpu_custom_call.1} parent=1 // pred_region
      %1525 = vsyncadd [#allocation5], 0
      %s1527 = sshll.u32 [#allocation6], 4
      %s1528 = int_to_ptr.vmem [resolvable:$true] %s1527
      %s1529 = sshll.u32 %s9, 4
      %s1530 = int_to_ptr.hbm [resolvable:$true] %s1529
      %1532 = dma.vmem_to_hbm [thread:$0]  %s1528, 16, %s1530, [#allocation5]
    $region45: #{tpu_custom_call.1} parent=1 // pred_fallthru
      _
    // Predicated region
    $region46: #{tpu_custom_call.1} parent=1 // pred_check
      _
    $region47: #{tpu_custom_call.1} parent=1 // pred_check_branch
      %1534 = sbr.rel (0) target = $region49
    $region48: #{tpu_custom_call.1} parent=1 // pred_region
      %1536 = dma.done [#allocation5], 16
    $region49: #{tpu_custom_call.1} parent=1 // pred_fallthru
      _
    %1537 = vsyncpa [#allocation4], 1
    %1538 = vsyncpa [#allocation5], 1

</llo_original>
